<compile_context>
chip_gen: v5e
topology: v5e:2x2
jax: 0.10.0
libtpu: 0.0.40
codegen_flags: <defaults>
</compile_context>

<pallas_src>
import functools

import jax
import jax.numpy as jnp
from jax.experimental import pallas as pl
from jax.experimental.pallas import tpu as pltpu


def _round_up(x, m):
    return ((x + m - 1) // m) * m


def _delas_kernel(
    L_ref, N_ref,                              # data tiles, [C, T] channels-first
    wg_l_ref, wg_n_ref, bg_ref,                # netG y1 head
    wa_y1_ref, wa_n_ref, wa_l_ref, ba_ref,     # netA merged (y2 | U) head, P folded
    y2_ref, u_ref,
    *, cy2,
):
    L = L_ref[...]          # [CL, T]   pixels on lanes
    N = N_ref[...]          # [CN, T]

    # ---- netG: y1 = tanh(Wg_L @ L + Wg_N @ N + bg) ----
    # (cat(L, N) @ W folded into split matmuls along the contraction axis.)
    y1 = jnp.tanh(
        jnp.dot(wg_l_ref[...], L, preferred_element_type=jnp.float32)
        + jnp.dot(wg_n_ref[...], N, preferred_element_type=jnp.float32)
        + bg_ref[...]
    )

    # ---- netA: merged (y2 | U) head with the linear P path pre-folded ----
    a = (
        jnp.dot(wa_y1_ref[...], y1, preferred_element_type=jnp.float32)
        + jnp.dot(wa_n_ref[...], N, preferred_element_type=jnp.float32)
        + jnp.dot(wa_l_ref[...], L, preferred_element_type=jnp.float32)
        + ba_ref[...]
    )

    y2_ref[...] = jnp.tanh(a[:cy2, :]).astype(y2_ref.dtype)
    u_ref[...] = a[cy2:, :].astype(u_ref.dtype)


def delas_generator_forward(L, N, params, *, tile_cols=2048):
    """L, N: NCHW float32 arrays. Returns (y2, U) in NCHW."""
    B, CL, H, W = L.shape
    _, CN, _, _ = N.shape
    HW = H * W

    CG = params["wgl_y"].shape[1]   # y1 channels
    CY2 = params["way"].shape[1]    # y2 channels
    CU = params["wuy"].shape[1]     # U channels

    # ---- weight preparation (tiny, once per call in XLA) ----
    # P = cat(L,N) @ [wgl_p; wgn_p] + bg_p is linear and never an output, so its
    # contribution through wap / wup collapses into composite weights on L, N
    # and the biases (identical up to fp reassociation).
    w_y2_L = params["wgl_p"] @ params["wap"]
    w_y2_N = params["wan"] + params["wgn_p"] @ params["wap"]
    b_y2 = params["ba_y2"] + params["bg_p"] @ params["wap"]
    w_u_L = params["wgl_p"] @ params["wup"]
    w_u_N = params["wun"] + params["wgn_p"] @ params["wup"]
    b_u = params["ba_u"] + params["bg_p"] @ params["wup"]

    # Channels-first orientation [Cout, Cin]; merge the y2 / U heads along Cout.
    wg_l = params["wgl_y"].T                    # [CG, CL]
    wg_n = params["wgn_y"].T                    # [CG, CN]
    bg = params["bg_y"].T                       # [CG, 1]
    wa_y1 = jnp.concatenate([params["way"].T, params["wuy"].T], axis=0)  # [CY2+CU, CG]
    wa_n = jnp.concatenate([w_y2_N.T, w_u_N.T], axis=0)                  # [CY2+CU, CN]
    wa_l = jnp.concatenate([w_y2_L.T, w_u_L.T], axis=0)                  # [CY2+CU, CL]
    ba = jnp.concatenate([b_y2.T, b_u.T], axis=0)                        # [CY2+CU, 1]

    # ---- lane-dense data layout: NCHW -> [B, C, H*W] (free reshape) ----
    L3 = L.reshape(B, CL, HW)
    N3 = N.reshape(B, CN, HW)

    hw_aligned = _round_up(HW, 128)
    tile = min(_round_up(tile_cols, 128), hw_aligned)
    hw_pad = _round_up(HW, tile)
    if hw_pad != HW:
        L3 = jnp.pad(L3, ((0, 0), (0, 0), (0, hw_pad - HW)))
        N3 = jnp.pad(N3, ((0, 0), (0, 0), (0, hw_pad - HW)))

    grid = (B, hw_pad // tile)

    data_spec = lambda c: pl.BlockSpec((None, c, tile), lambda b, j: (b, 0, j))
    w_spec = lambda r, c: pl.BlockSpec((r, c), lambda b, j: (0, 0))

    kernel = functools.partial(_delas_kernel, cy2=CY2)

    y2_cf, u_cf = pl.pallas_call(
        kernel,
        out_shape=(
            jax.ShapeDtypeStruct((B, CY2, hw_pad), jnp.float32),
            jax.ShapeDtypeStruct((B, CU, hw_pad), jnp.float32),
        ),
        grid_spec=pltpu.PrefetchScalarGridSpec(
            num_scalar_prefetch=0,
            grid=grid,
            in_specs=[
                data_spec(CL), data_spec(CN),
                w_spec(CG, CL), w_spec(CG, CN), w_spec(CG, 1),
                w_spec(CY2 + CU, CG), w_spec(CY2 + CU, CN),
                w_spec(CY2 + CU, CL), w_spec(CY2 + CU, 1),
            ],
            out_specs=[data_spec(CY2), data_spec(CU)],
        ),
        compiler_params=pltpu.CompilerParams(
            dimension_semantics=("parallel", "parallel")),
    )(L3, N3, wg_l, wg_n, bg, wa_y1, wa_n, wa_l, ba)

    # [B, C, HWpad] -> NCHW (slice off lane padding, free reshape).
    y2 = y2_cf[:, :, :HW].reshape(B, CY2, H, W)
    U = u_cf[:, :, :HW].reshape(B, CU, H, W)
    return y2, U


def _reference_forward(L, N, params):
    """Plain-JAX reference of the same synthetic netG/netA composition
    (computes P explicitly, un-folded weights)."""
    B, CL, H, W = L.shape
    CN = N.shape[1]
    L2 = jnp.transpose(L, (0, 2, 3, 1)).reshape(-1, CL)
    N2 = jnp.transpose(N, (0, 2, 3, 1)).reshape(-1, CN)
    x = jnp.concatenate([L2, N2], axis=-1)               # cat(L, N, dim=1)
    wg_y = jnp.concatenate([params["wgl_y"], params["wgn_y"]], axis=0)
    wg_p = jnp.concatenate([params["wgl_p"], params["wgn_p"]], axis=0)
    y1 = jnp.tanh(x @ wg_y + params["bg_y"])
    P = x @ wg_p + params["bg_p"]
    a = jnp.concatenate([y1, N2, P], axis=-1)             # netA(y1, N, P)
    wa_y = jnp.concatenate([params["way"], params["wan"], params["wap"]], axis=0)
    wa_u = jnp.concatenate([params["wuy"], params["wun"], params["wup"]], axis=0)
    y2 = jnp.tanh(a @ wa_y + params["ba_y2"])
    U = a @ wa_u + params["ba_u"]
    CY2 = y2.shape[-1]
    CU = U.shape[-1]
    y2 = jnp.transpose(y2.reshape(B, H, W, CY2), (0, 3, 1, 2))
    U = jnp.transpose(U.reshape(B, H, W, CU), (0, 3, 1, 2))
    return y2, U


def _make_params(CL, CN, CG, CP, CY2, CU):
    """Deterministic synthetic weight init (no checkpoint loading)."""
    key = jax.random.PRNGKey(42)
    ks = jax.random.split(key, 12)
    f = lambda k, shp, fan_in: (jax.random.normal(k, shp, jnp.float32)
                                / jnp.sqrt(jnp.float32(fan_in)))
    return dict(
        wgl_y=f(ks[0], (CL, CG), CL + CN), wgn_y=f(ks[1], (CN, CG), CL + CN),
        bg_y=jnp.zeros((1, CG), jnp.float32),
        wgl_p=f(ks[2], (CL, CP), CL + CN), wgn_p=f(ks[3], (CN, CP), CL + CN),
        bg_p=jnp.zeros((1, CP), jnp.float32),
        way=f(ks[4], (CG, CY2), CG + CN + CP), wan=f(ks[5], (CN, CY2), CG + CN + CP),
        wap=f(ks[6], (CP, CY2), CG + CN + CP),
        ba_y2=jnp.zeros((1, CY2), jnp.float32),
        wuy=f(ks[7], (CG, CU), CG + CN + CP), wun=f(ks[8], (CN, CU), CG + CN + CP),
        wup=f(ks[9], (CP, CU), CG + CN + CP),
        ba_u=jnp.zeros((1, CU), jnp.float32),
    )


if __name__ == "__main__":
    # Small shapes consistent with the module's NCHW conv-style interface.
    B, CL, CN, H, W = 2, 4, 4, 16, 16
    CG, CP, CY2, CU = 4, 4, 4, 4

    key = jax.random.PRNGKey(0)
    kL, kN = jax.random.split(key)
    L = jax.random.normal(kL, (B, CL, H, W), jnp.float32)
    N = jax.random.normal(kN, (B, CN, H, W), jnp.float32)

    params = _make_params(CL, CN, CG, CP, CY2, CU)

    y2, U = delas_generator_forward(L, N, params)
    jax.block_until_ready((y2, U))

    y2_ref, U_ref = _reference_forward(L, N, params)
    assert y2.shape == (B, CY2, H, W) and U.shape == (B, CU, H, W)
    assert jnp.allclose(y2, y2_ref, atol=2e-5, rtol=1e-4)
    assert jnp.allclose(U, U_ref, atol=2e-5, rtol=1e-4)

    print("KERNEL_OK")
</pallas_src>

<mosaic_0001>
module attributes {stable_mosaic.version = 11 : i64} {
  func.func @_delas_kernel(%arg0: i32, %arg1: i32, %arg2: memref<1x4x256xf32, #tpu.memory_space<vmem>>, %arg3: memref<1x4x256xf32, #tpu.memory_space<vmem>>, %arg4: memref<4x4xf32, #tpu.memory_space<vmem>>, %arg5: memref<4x4xf32, #tpu.memory_space<vmem>>, %arg6: memref<4x1xf32, #tpu.memory_space<vmem>>, %arg7: memref<8x4xf32, #tpu.memory_space<vmem>>, %arg8: memref<8x4xf32, #tpu.memory_space<vmem>>, %arg9: memref<8x4xf32, #tpu.memory_space<vmem>>, %arg10: memref<8x1xf32, #tpu.memory_space<vmem>>, %arg11: memref<1x4x256xf32, #tpu.memory_space<vmem>>, %arg12: memref<1x4x256xf32, #tpu.memory_space<vmem>>) attributes {dimension_semantics = [#tpu.dimension_semantics<parallel>, #tpu.dimension_semantics<parallel>], iteration_bounds = array<i64: 2, 1>, scalar_prefetch = 0 : i64, scratch_operands = 0 : i64, tpu.core_type = #tpu.core_type<tc>, window_params = [{transform_indices = @transform_0, window_bounds = array<i64: 1, 4, 256>}, {transform_indices = @transform_1, window_bounds = array<i64: 1, 4, 256>}, {pipeline_mode = #tpu.pipeline_mode<synchronous>, transform_indices = @transform_2, window_bounds = array<i64: 4, 4>}, {pipeline_mode = #tpu.pipeline_mode<synchronous>, transform_indices = @transform_3, window_bounds = array<i64: 4, 4>}, {pipeline_mode = #tpu.pipeline_mode<synchronous>, transform_indices = @transform_4, window_bounds = array<i64: 4, 1>}, {pipeline_mode = #tpu.pipeline_mode<synchronous>, transform_indices = @transform_5, window_bounds = array<i64: 8, 4>}, {pipeline_mode = #tpu.pipeline_mode<synchronous>, transform_indices = @transform_6, window_bounds = array<i64: 8, 4>}, {pipeline_mode = #tpu.pipeline_mode<synchronous>, transform_indices = @transform_7, window_bounds = array<i64: 8, 4>}, {pipeline_mode = #tpu.pipeline_mode<synchronous>, transform_indices = @transform_8, window_bounds = array<i64: 8, 1>}, {transform_indices = @transform_9, window_bounds = array<i64: 1, 4, 256>}, {transform_indices = @transform_10, window_bounds = array<i64: 1, 4, 256>}]} {
    %c0 = arith.constant 0 : index
    %c0_0 = arith.constant 0 : index
    %c0_1 = arith.constant 0 : index
    %0 = vector.load %arg2[%c0, %c0_0, %c0_1] : memref<1x4x256xf32, #tpu.memory_space<vmem>>, vector<1x4x256xf32>
    %1 = vector.shape_cast %0 : vector<1x4x256xf32> to vector<4x256xf32>
    %c0_2 = arith.constant 0 : index
    %c0_3 = arith.constant 0 : index
    %c0_4 = arith.constant 0 : index
    %2 = vector.load %arg3[%c0_2, %c0_3, %c0_4] : memref<1x4x256xf32, #tpu.memory_space<vmem>>, vector<1x4x256xf32>
    %3 = vector.shape_cast %2 : vector<1x4x256xf32> to vector<4x256xf32>
    %c0_5 = arith.constant 0 : index
    %c0_6 = arith.constant 0 : index
    %4 = vector.load %arg4[%c0_5, %c0_6] : memref<4x4xf32, #tpu.memory_space<vmem>>, vector<4x4xf32>
    %cst = arith.constant dense<0.000000e+00> : vector<4x256xf32>
    %5 = tpu.matmul %4, %1, %cst {dimension_numbers = #tpu.dot_dimension_numbers<[1], [0], [0], [1], [0, 0, 1, 1], [], []>} : vector<4x4xf32>, vector<4x256xf32>, vector<4x256xf32> -> vector<4x256xf32>
    %c0_7 = arith.constant 0 : index
    %c0_8 = arith.constant 0 : index
    %6 = vector.load %arg5[%c0_7, %c0_8] : memref<4x4xf32, #tpu.memory_space<vmem>>, vector<4x4xf32>
    %cst_9 = arith.constant dense<0.000000e+00> : vector<4x256xf32>
    %7 = tpu.matmul %6, %3, %cst_9 {dimension_numbers = #tpu.dot_dimension_numbers<[1], [0], [0], [1], [0, 0, 1, 1], [], []>} : vector<4x4xf32>, vector<4x256xf32>, vector<4x256xf32> -> vector<4x256xf32>
    %8 = arith.addf %5, %7 : vector<4x256xf32>
    %c0_10 = arith.constant 0 : index
    %c0_11 = arith.constant 0 : index
    %9 = vector.load %arg6[%c0_10, %c0_11] : memref<4x1xf32, #tpu.memory_space<vmem>>, vector<4x1xf32>
    %10 = vector.broadcast %9 : vector<4x1xf32> to vector<4x256xf32>
    %11 = arith.addf %8, %10 : vector<4x256xf32>
    %12 = math.tanh %11 : vector<4x256xf32>
    %c0_12 = arith.constant 0 : index
    %c0_13 = arith.constant 0 : index
    %13 = vector.load %arg7[%c0_12, %c0_13] : memref<8x4xf32, #tpu.memory_space<vmem>>, vector<8x4xf32>
    %cst_14 = arith.constant dense<0.000000e+00> : vector<8x256xf32>
    %14 = tpu.matmul %13, %12, %cst_14 {dimension_numbers = #tpu.dot_dimension_numbers<[1], [0], [0], [1], [0, 0, 1, 1], [], []>} : vector<8x4xf32>, vector<4x256xf32>, vector<8x256xf32> -> vector<8x256xf32>
    %c0_15 = arith.constant 0 : index
    %c0_16 = arith.constant 0 : index
    %15 = vector.load %arg8[%c0_15, %c0_16] : memref<8x4xf32, #tpu.memory_space<vmem>>, vector<8x4xf32>
    %cst_17 = arith.constant dense<0.000000e+00> : vector<8x256xf32>
    %16 = tpu.matmul %15, %3, %cst_17 {dimension_numbers = #tpu.dot_dimension_numbers<[1], [0], [0], [1], [0, 0, 1, 1], [], []>} : vector<8x4xf32>, vector<4x256xf32>, vector<8x256xf32> -> vector<8x256xf32>
    %17 = arith.addf %14, %16 : vector<8x256xf32>
    %c0_18 = arith.constant 0 : index
    %c0_19 = arith.constant 0 : index
    %18 = vector.load %arg9[%c0_18, %c0_19] : memref<8x4xf32, #tpu.memory_space<vmem>>, vector<8x4xf32>
    %cst_20 = arith.constant dense<0.000000e+00> : vector<8x256xf32>
    %19 = tpu.matmul %18, %1, %cst_20 {dimension_numbers = #tpu.dot_dimension_numbers<[1], [0], [0], [1], [0, 0, 1, 1], [], []>} : vector<8x4xf32>, vector<4x256xf32>, vector<8x256xf32> -> vector<8x256xf32>
    %20 = arith.addf %17, %19 : vector<8x256xf32>
    %c0_21 = arith.constant 0 : index
    %c0_22 = arith.constant 0 : index
    %21 = vector.load %arg10[%c0_21, %c0_22] : memref<8x1xf32, #tpu.memory_space<vmem>>, vector<8x1xf32>
    %22 = vector.broadcast %21 : vector<8x1xf32> to vector<8x256xf32>
    %23 = arith.addf %20, %22 : vector<8x256xf32>
    %24 = vector.extract_strided_slice %23 {offsets = [0, 0], sizes = [4, 256], strides = [1, 1]} : vector<8x256xf32> to vector<4x256xf32>
    %25 = math.tanh %24 : vector<4x256xf32>
    %c0_23 = arith.constant 0 : index
    %c0_24 = arith.constant 0 : index
    %c0_25 = arith.constant 0 : index
    %26 = vector.load %arg11[%c0_23, %c0_24, %c0_25] : memref<1x4x256xf32, #tpu.memory_space<vmem>>, vector<1x4x256xf32>
    %27 = vector.shape_cast %26 : vector<1x4x256xf32> to vector<4x256xf32>
    %28 = vector.shape_cast %25 : vector<4x256xf32> to vector<1x4x256xf32>
    tpu.vector_store %arg11[%c0_23, %c0_24, %c0_25], %28 {strides = array<i32>} : memref<1x4x256xf32, #tpu.memory_space<vmem>>, vector<1x4x256xf32>,
    %29 = vector.extract_strided_slice %23 {offsets = [4, 0], sizes = [4, 256], strides = [1, 1]} : vector<8x256xf32> to vector<4x256xf32>
    %c0_26 = arith.constant 0 : index
    %c0_27 = arith.constant 0 : index
    %c0_28 = arith.constant 0 : index
    %30 = vector.load %arg12[%c0_26, %c0_27, %c0_28] : memref<1x4x256xf32, #tpu.memory_space<vmem>>, vector<1x4x256xf32>
    %31 = vector.shape_cast %30 : vector<1x4x256xf32> to vector<4x256xf32>
    %32 = vector.shape_cast %29 : vector<4x256xf32> to vector<1x4x256xf32>
    tpu.vector_store %arg12[%c0_26, %c0_27, %c0_28], %32 {strides = array<i32>} : memref<1x4x256xf32, #tpu.memory_space<vmem>>, vector<1x4x256xf32>,
    return
  }
  func.func @transform_0(%arg0: i32, %arg1: i32) -> (i32, i32, i32) {
    %c0_i32 = arith.constant 0 : i32
    %c0_i32_0 = arith.constant 0 : i32
    return %arg0, %c0_i32, %arg1 : i32, i32, i32
  }
  func.func @transform_1(%arg0: i32, %arg1: i32) -> (i32, i32, i32) {
    %c0_i32 = arith.constant 0 : i32
    %c0_i32_0 = arith.constant 0 : i32
    return %arg0, %c0_i32, %arg1 : i32, i32, i32
  }
  func.func @transform_2(%arg0: i32, %arg1: i32) -> (i32, i32) {
    %c0_i32 = arith.constant 0 : i32
    %c0_i32_0 = arith.constant 0 : i32
    %c0_i32_1 = arith.constant 0 : i32
    return %c0_i32, %c0_i32_0 : i32, i32
  }
  func.func @transform_3(%arg0: i32, %arg1: i32) -> (i32, i32) {
    %c0_i32 = arith.constant 0 : i32
    %c0_i32_0 = arith.constant 0 : i32
    %c0_i32_1 = arith.constant 0 : i32
    return %c0_i32, %c0_i32_0 : i32, i32
  }
  func.func @transform_4(%arg0: i32, %arg1: i32) -> (i32, i32) {
    %c0_i32 = arith.constant 0 : i32
    %c0_i32_0 = arith.constant 0 : i32
    %c0_i32_1 = arith.constant 0 : i32
    return %c0_i32, %c0_i32_0 : i32, i32
  }
  func.func @transform_5(%arg0: i32, %arg1: i32) -> (i32, i32) {
    %c0_i32 = arith.constant 0 : i32
    %c0_i32_0 = arith.constant 0 : i32
    %c0_i32_1 = arith.constant 0 : i32
    return %c0_i32, %c0_i32_0 : i32, i32
  }
  func.func @transform_6(%arg0: i32, %arg1: i32) -> (i32, i32) {
    %c0_i32 = arith.constant 0 : i32
    %c0_i32_0 = arith.constant 0 : i32
    %c0_i32_1 = arith.constant 0 : i32
    return %c0_i32, %c0_i32_0 : i32, i32
  }
  func.func @transform_7(%arg0: i32, %arg1: i32) -> (i32, i32) {
    %c0_i32 = arith.constant 0 : i32
    %c0_i32_0 = arith.constant 0 : i32
    %c0_i32_1 = arith.constant 0 : i32
    return %c0_i32, %c0_i32_0 : i32, i32
  }
  func.func @transform_8(%arg0: i32, %arg1: i32) -> (i32, i32) {
    %c0_i32 = arith.constant 0 : i32
    %c0_i32_0 = arith.constant 0 : i32
    %c0_i32_1 = arith.constant 0 : i32
    return %c0_i32, %c0_i32_0 : i32, i32
  }
  func.func @transform_9(%arg0: i32, %arg1: i32) -> (i32, i32, i32) {
    %c0_i32 = arith.constant 0 : i32
    %c0_i32_0 = arith.constant 0 : i32
    return %arg0, %c0_i32, %arg1 : i32, i32, i32
  }
  func.func @transform_10(%arg0: i32, %arg1: i32) -> (i32, i32, i32) {
    %c0_i32 = arith.constant 0 : i32
    %c0_i32_0 = arith.constant 0 : i32
    return %arg0, %c0_i32, %arg1 : i32, i32, i32
  }
}

</mosaic_0001>

<llo_original>
// kernel: tpu_custom_call.1
$region0: #{tpu_custom_call.1}
  #allocation0 [shape = 'u32[]', space=smem, size = 0x4, offset = 0x4, fixed_abs, tag = 'smem constant byte address 0x4 - core index']
  #allocation1 [shape = 'u32[72,128]{1,0:T(1,128)}', space=vmem, size = 0x9000, scoped, tag = 'internal scratch']
  %s0 = inlined_call_operand.vmem [shape: f32[2,4,256], index: 0, kind: input, shape index: {}]
  %s1 = inlined_call_operand.hbm [shape: f32[2,4,256], index: 1, kind: input, shape index: {}]
  %s2 = inlined_call_operand.vmem [shape: f32[4,4], index: 2, kind: input, shape index: {}]
  %s3 = inlined_call_operand.vmem [shape: f32[4,4], index: 3, kind: input, shape index: {}]
  %s4 = inlined_call_operand.vmem [shape: f32[4,1], index: 4, kind: input, shape index: {}]
  %s5 = inlined_call_operand.vmem [shape: f32[8,4], index: 5, kind: input, shape index: {}]
  %s6 = inlined_call_operand.vmem [shape: f32[8,4], index: 6, kind: input, shape index: {}]
  %s7 = inlined_call_operand.vmem [shape: f32[8,4], index: 7, kind: input, shape index: {}]
  %s8 = inlined_call_operand.vmem [shape: f32[8,1], index: 8, kind: input, shape index: {}]
  %s9 = inlined_call_operand.hbm [shape: f32[2,4,256], index: 9, kind: output, shape index: {0}]
  %s10 = inlined_call_operand.hbm [shape: f32[2,4,256], index: 10, kind: output, shape index: {1}]
  %11 = xla_tuple %s9, %s10
  %s12 = sld [smem:[#allocation0]]
  $region81: #{tpu_custom_call.1} parent=0
    _
  %s14 = ssub.s32 1, %s12
  %s15 = scalar_select 0, %s14, %s12
  $region1: #{tpu_custom_call.1} parent=0
    #allocation2 [shape = 'u8[8192]{0}', space=vmem, size = 0x2000, scoped, tag = 'input window, operand 1']
    #allocation3 [shape = 's32[2]{0}', space=sflag, size = 0x8, scoped, tag = 'scoped memory for tpu_custom_call.1']
    #allocation4 [shape = 's32[2]{0}', space=sflag, size = 0x8, scoped, tag = 'scoped memory for tpu_custom_call.1']
    #allocation5 [shape = 'u8[8192]{0}', space=vmem, size = 0x2000, scoped, tag = 'output window, operand 0']
    #allocation6 [shape = 'u8[8192]{0}', space=vmem, size = 0x2000, scoped, tag = 'output window, operand 1']
    #allocation7 [shape = 's32[2]{0}', space=sflag, size = 0x8, scoped, tag = 'scoped memory for tpu_custom_call.1']
    %16 = vsyncpa [#allocation3], 0
    %s17 = scalar_lea.sflag [#allocation3], 1
    %18 = vsyncpa %s17, 0
    %19 = vsyncpa [#allocation4], 0
    %s20 = scalar_lea.sflag [#allocation4], 1
    %21 = vsyncpa %s20, 0
    %22 = vsyncpa [#allocation7], 0
    %s23 = scalar_lea.sflag [#allocation7], 1
    %24 = vsyncpa %s23, 0
    loop: start=0, step=1, limit=4
    $region2: #{tpu_custom_call.1} parent=1 // loop_pre_header
      _
    $region3: #{tpu_custom_call.1} parent=1 // loop_header
      %s26 = sphi 0, %s30
      %p27 = scmp.ge.s32.totalorder %s26, 4
      %s33 = sphi 0, %s45
      %s34 = sphi 0, %s41
      %s35 = sphi 0, %s33
      %s36 = sphi 0, %s34
      %s37 = sphi 0, %s35
      %s38 = sphi 0, %s36
      %s50 = sphi 0, %s52
      %s53 = sphi 0, %s50
      %s54 = sphi 0, %s53
      %s70 = sphi 0, %s54
      %s78 = sphi 0, %s80
      %s81 = sphi 0, %s78
      %s82 = sphi 0, %s81
      %s98 = sphi 0, %s82
      %s102 = sphi 0, %s102
      %s104 = sphi 0, %s102
      %s105 = sphi 0, %s104
      %s119 = sphi 0, %s105
      %s123 = sphi 0, %s123
      %s125 = sphi 0, %s123
      %s126 = sphi 0, %s125
      %s140 = sphi 0, %s126
      %s144 = sphi 0, %s144
      %s146 = sphi 0, %s144
      %s147 = sphi 0, %s146
      %s161 = sphi 0, %s147
      %s165 = sphi 0, %s165
      %s167 = sphi 0, %s165
      %s168 = sphi 0, %s167
      %s182 = sphi 0, %s168
      %s186 = sphi 0, %s186
      %s188 = sphi 0, %s186
      %s189 = sphi 0, %s188
      %s203 = sphi 0, %s189
      %s207 = sphi 0, %s207
      %s209 = sphi 0, %s207
      %s210 = sphi 0, %s209
      %s224 = sphi 0, %s210
      %s228 = sphi 0, %s228
      %s230 = sphi 0, %s228
      %s231 = sphi 0, %s230
      %s245 = sphi 0, %s231
      %s253 = sphi 0, %s255
      %s256 = sphi 0, %s253
      %s257 = sphi 0, %s256
      %s273 = sphi 0, %s257
      %s281 = sphi 0, %s283
      %s284 = sphi 0, %s281
      %s285 = sphi 0, %s284
      %s301 = sphi 0, %s285
    $region4: #{tpu_custom_call.1} parent=1 // loop_header_branch
      %29 = sbr.rel (%p27) target = $region8
    $region5: #{tpu_custom_call.1} parent=1 // loop_body
      %s31 = ssub.s32 %s26, 1
      %s32 = ssub.s32 %s26, 2
      %s39 = sadd.s32 1, %s34
      %p40 = scmp.ge.s32.totalorder %s39, 1
      %s41 = scalar_select %p40, 0, %s39
      %s42 = sadd.s32 1, %s33
      %s43 = scalar_select %p40, %s42, %s33
      %p44 = scmp.ge.s32.totalorder %s43, 2
      %s45 = scalar_select %p44, 0, %s43
      %s46 = ssub.s32 %s33, %s45
      %s47 = ssub.s32 %s34, %s41
      %s48 = sor.u32 %s46, %s47
      %p49 = scmp.eq.s32.totalorder %s48, 0
      %s51 = sadd.s32 %s50, 1
      %s52 = scalar_select %p49, %s50, %s51
      %p55 = pneg %p49
      %p56 = scmp.eq.s32.totalorder %s26, 1
      %p57 = por %p55, %p56
      %p58 = scmp.ne.s32.totalorder %s50, %s53
      %p59 = scmp.eq.s32.totalorder %s26, 0
      %p60 = por %p58, %p59
      %p61 = scmp.ne.s32.totalorder %s50, %s53
      %p62 = scmp.eq.s32.totalorder %s31, 1
      %p63 = por %p61, %p62
      %p64 = scmp.ne.s32.totalorder %s53, %s54
      %p65 = scmp.eq.s32.totalorder %s31, 0
      %p66 = por %p64, %p65
      %p67 = scmp.ne.s32.totalorder %s53, %s54
      %p68 = scmp.eq.s32.totalorder %s32, 1
      %p69 = por %p67, %p68
      %p71 = scmp.ne.s32.totalorder %s54, %s70
      %p72 = scmp.eq.s32.totalorder %s32, 0
      %p73 = por %p71, %p72
      %s74 = ssub.s32 %s33, %s45
      %s75 = ssub.s32 %s34, %s41
      %s76 = sor.u32 %s74, %s75
      %p77 = scmp.eq.s32.totalorder %s76, 0
      %s79 = sadd.s32 %s78, 1
      %s80 = scalar_select %p77, %s78, %s79
      %p83 = pneg %p77
      %p84 = scmp.eq.s32.totalorder %s26, 1
      %p85 = por %p83, %p84
      %p86 = scmp.ne.s32.totalorder %s78, %s81
      %p87 = scmp.eq.s32.totalorder %s26, 0
      %p88 = por %p86, %p87
      %p89 = scmp.ne.s32.totalorder %s78, %s81
      %p90 = scmp.eq.s32.totalorder %s31, 1
      %p91 = por %p89, %p90
      %p92 = scmp.ne.s32.totalorder %s81, %s82
      %p93 = scmp.eq.s32.totalorder %s31, 0
      %p94 = por %p92, %p93
      %p95 = scmp.ne.s32.totalorder %s81, %s82
      %p96 = scmp.eq.s32.totalorder %s32, 1
      %p97 = por %p95, %p96
      %p99 = scmp.ne.s32.totalorder %s82, %s98
      %p100 = scmp.eq.s32.totalorder %s32, 0
      %p101 = por %p99, %p100
      %s103 = sadd.s32 %s102, 1
      %p106 = scmp.eq.s32.totalorder %s26, 1
      %p107 = scmp.ne.s32.totalorder %s102, %s104
      %p108 = scmp.eq.s32.totalorder %s26, 0
      %p109 = por %p107, %p108
      %p110 = scmp.ne.s32.totalorder %s102, %s104
      %p111 = scmp.eq.s32.totalorder %s31, 1
      %p112 = por %p110, %p111
      %p113 = scmp.ne.s32.totalorder %s104, %s105
      %p114 = scmp.eq.s32.totalorder %s31, 0
      %p115 = por %p113, %p114
      %p116 = scmp.ne.s32.totalorder %s104, %s105
      %p117 = scmp.eq.s32.totalorder %s32, 1
      %p118 = por %p116, %p117
      %p120 = scmp.ne.s32.totalorder %s105, %s119
      %p121 = scmp.eq.s32.totalorder %s32, 0
      %p122 = por %p120, %p121
      %s124 = sadd.s32 %s123, 1
      %p127 = scmp.eq.s32.totalorder %s26, 1
      %p128 = scmp.ne.s32.totalorder %s123, %s125
      %p129 = scmp.eq.s32.totalorder %s26, 0
      %p130 = por %p128, %p129
      %p131 = scmp.ne.s32.totalorder %s123, %s125
      %p132 = scmp.eq.s32.totalorder %s31, 1
      %p133 = por %p131, %p132
      %p134 = scmp.ne.s32.totalorder %s125, %s126
      %p135 = scmp.eq.s32.totalorder %s31, 0
      %p136 = por %p134, %p135
      %p137 = scmp.ne.s32.totalorder %s125, %s126
      %p138 = scmp.eq.s32.totalorder %s32, 1
      %p139 = por %p137, %p138
      %p141 = scmp.ne.s32.totalorder %s126, %s140
      %p142 = scmp.eq.s32.totalorder %s32, 0
      %p143 = por %p141, %p142
      %s145 = sadd.s32 %s144, 1
      %p148 = scmp.eq.s32.totalorder %s26, 1
      %p149 = scmp.ne.s32.totalorder %s144, %s146
      %p150 = scmp.eq.s32.totalorder %s26, 0
      %p151 = por %p149, %p150
      %p152 = scmp.ne.s32.totalorder %s144, %s146
      %p153 = scmp.eq.s32.totalorder %s31, 1
      %p154 = por %p152, %p153
      %p155 = scmp.ne.s32.totalorder %s146, %s147
      %p156 = scmp.eq.s32.totalorder %s31, 0
      %p157 = por %p155, %p156
      %p158 = scmp.ne.s32.totalorder %s146, %s147
      %p159 = scmp.eq.s32.totalorder %s32, 1
      %p160 = por %p158, %p159
      %p162 = scmp.ne.s32.totalorder %s147, %s161
      %p163 = scmp.eq.s32.totalorder %s32, 0
      %p164 = por %p162, %p163
      %s166 = sadd.s32 %s165, 1
      %p169 = scmp.eq.s32.totalorder %s26, 1
      %p170 = scmp.ne.s32.totalorder %s165, %s167
      %p171 = scmp.eq.s32.totalorder %s26, 0
      %p172 = por %p170, %p171
      %p173 = scmp.ne.s32.totalorder %s165, %s167
      %p174 = scmp.eq.s32.totalorder %s31, 1
      %p175 = por %p173, %p174
      %p176 = scmp.ne.s32.totalorder %s167, %s168
      %p177 = scmp.eq.s32.totalorder %s31, 0
      %p178 = por %p176, %p177
      %p179 = scmp.ne.s32.totalorder %s167, %s168
      %p180 = scmp.eq.s32.totalorder %s32, 1
      %p181 = por %p179, %p180
      %p183 = scmp.ne.s32.totalorder %s168, %s182
      %p184 = scmp.eq.s32.totalorder %s32, 0
      %p185 = por %p183, %p184
      %s187 = sadd.s32 %s186, 1
      %p190 = scmp.eq.s32.totalorder %s26, 1
      %p191 = scmp.ne.s32.totalorder %s186, %s188
      %p192 = scmp.eq.s32.totalorder %s26, 0
      %p193 = por %p191, %p192
      %p194 = scmp.ne.s32.totalorder %s186, %s188
      %p195 = scmp.eq.s32.totalorder %s31, 1
      %p196 = por %p194, %p195
      %p197 = scmp.ne.s32.totalorder %s188, %s189
      %p198 = scmp.eq.s32.totalorder %s31, 0
      %p199 = por %p197, %p198
      %p200 = scmp.ne.s32.totalorder %s188, %s189
      %p201 = scmp.eq.s32.totalorder %s32, 1
      %p202 = por %p200, %p201
      %p204 = scmp.ne.s32.totalorder %s189, %s203
      %p205 = scmp.eq.s32.totalorder %s32, 0
      %p206 = por %p204, %p205
      %s208 = sadd.s32 %s207, 1
      %p211 = scmp.eq.s32.totalorder %s26, 1
      %p212 = scmp.ne.s32.totalorder %s207, %s209
      %p213 = scmp.eq.s32.totalorder %s26, 0
      %p214 = por %p212, %p213
      %p215 = scmp.ne.s32.totalorder %s207, %s209
      %p216 = scmp.eq.s32.totalorder %s31, 1
      %p217 = por %p215, %p216
      %p218 = scmp.ne.s32.totalorder %s209, %s210
      %p219 = scmp.eq.s32.totalorder %s31, 0
      %p220 = por %p218, %p219
      %p221 = scmp.ne.s32.totalorder %s209, %s210
      %p222 = scmp.eq.s32.totalorder %s32, 1
      %p223 = por %p221, %p222
      %p225 = scmp.ne.s32.totalorder %s210, %s224
      %p226 = scmp.eq.s32.totalorder %s32, 0
      %p227 = por %p225, %p226
      %s229 = sadd.s32 %s228, 1
      %p232 = scmp.eq.s32.totalorder %s26, 1
      %p233 = scmp.ne.s32.totalorder %s228, %s230
      %p234 = scmp.eq.s32.totalorder %s26, 0
      %p235 = por %p233, %p234
      %p236 = scmp.ne.s32.totalorder %s228, %s230
      %p237 = scmp.eq.s32.totalorder %s31, 1
      %p238 = por %p236, %p237
      %p239 = scmp.ne.s32.totalorder %s230, %s231
      %p240 = scmp.eq.s32.totalorder %s31, 0
      %p241 = por %p239, %p240
      %p242 = scmp.ne.s32.totalorder %s230, %s231
      %p243 = scmp.eq.s32.totalorder %s32, 1
      %p244 = por %p242, %p243
      %p246 = scmp.ne.s32.totalorder %s231, %s245
      %p247 = scmp.eq.s32.totalorder %s32, 0
      %p248 = por %p246, %p247
      %s249 = ssub.s32 %s33, %s45
      %s250 = ssub.s32 %s34, %s41
      %s251 = sor.u32 %s249, %s250
      %p252 = scmp.eq.s32.totalorder %s251, 0
      %s254 = sadd.s32 %s253, 1
      %s255 = scalar_select %p252, %s253, %s254
      %p258 = pneg %p252
      %p259 = scmp.eq.s32.totalorder %s26, 1
      %p260 = por %p258, %p259
      %p261 = scmp.ne.s32.totalorder %s253, %s256
      %p262 = scmp.eq.s32.totalorder %s26, 0
      %p263 = por %p261, %p262
      %p264 = scmp.ne.s32.totalorder %s253, %s256
      %p265 = scmp.eq.s32.totalorder %s31, 1
      %p266 = por %p264, %p265
      %p267 = scmp.ne.s32.totalorder %s256, %s257
      %p268 = scmp.eq.s32.totalorder %s31, 0
      %p269 = por %p267, %p268
      %p270 = scmp.ne.s32.totalorder %s256, %s257
      %p271 = scmp.eq.s32.totalorder %s32, 1
      %p272 = por %p270, %p271
      %p274 = scmp.ne.s32.totalorder %s257, %s273
      %p275 = scmp.eq.s32.totalorder %s32, 0
      %p276 = por %p274, %p275
      %s277 = ssub.s32 %s33, %s45
      %s278 = ssub.s32 %s34, %s41
      %s279 = sor.u32 %s277, %s278
      %p280 = scmp.eq.s32.totalorder %s279, 0
      %s282 = sadd.s32 %s281, 1
      %s283 = scalar_select %p280, %s281, %s282
      %p286 = pneg %p280
      %p287 = scmp.eq.s32.totalorder %s26, 1
      %p288 = por %p286, %p287
      %p289 = scmp.ne.s32.totalorder %s281, %s284
      %p290 = scmp.eq.s32.totalorder %s26, 0
      %p291 = por %p289, %p290
      %p292 = scmp.ne.s32.totalorder %s281, %s284
      %p293 = scmp.eq.s32.totalorder %s31, 1
      %p294 = por %p292, %p293
      %p295 = scmp.ne.s32.totalorder %s284, %s285
      %p296 = scmp.eq.s32.totalorder %s31, 0
      %p297 = por %p295, %p296
      %p298 = scmp.ne.s32.totalorder %s284, %s285
      %p299 = scmp.eq.s32.totalorder %s32, 1
      %p300 = por %p298, %p299
      %p302 = scmp.ne.s32.totalorder %s285, %s301
      %p303 = scmp.eq.s32.totalorder %s32, 0
      %p304 = por %p302, %p303
      %p305 = scmp.le.s32.totalorder 1, %s26
      %p306 = scmp.lt.s32.totalorder %s26, 3
      %p307 = pnand %p305, %p306
      %p308 = pneg %p307
      // Predicated region
      $region9: #{tpu_custom_call.1} parent=5 // pred_check
        _
      $region10: #{tpu_custom_call.1} parent=5 // pred_check_branch
        %310 = sbr.rel (%p307) target = $region12
      $region11: #{tpu_custom_call.1} parent=5 // pred_region
        %s311 = ssub.s32 %s26, 1
        // Predicated region
        $region13: #{tpu_custom_call.1} parent=11 // pred_check
          %p312 = pneg %p115
        $region14: #{tpu_custom_call.1} parent=11 // pred_check_branch
          %314 = sbr.rel (%p312) target = $region16
        $region15: #{tpu_custom_call.1} parent=11 // pred_region
          _
        $region16: #{tpu_custom_call.1} parent=11 // pred_fallthru
          _
        // Predicated region
        $region17: #{tpu_custom_call.1} parent=11 // pred_check
          %p315 = pneg %p136
        $region18: #{tpu_custom_call.1} parent=11 // pred_check_branch
          %317 = sbr.rel (%p315) target = $region20
        $region19: #{tpu_custom_call.1} parent=11 // pred_region
          _
        $region20: #{tpu_custom_call.1} parent=11 // pred_fallthru
          _
        // Predicated region
        $region21: #{tpu_custom_call.1} parent=11 // pred_check
          %p318 = pneg %p157
        $region22: #{tpu_custom_call.1} parent=11 // pred_check_branch
          %320 = sbr.rel (%p318) target = $region24
        $region23: #{tpu_custom_call.1} parent=11 // pred_region
          _
        $region24: #{tpu_custom_call.1} parent=11 // pred_fallthru
          _
        // Predicated region
        $region25: #{tpu_custom_call.1} parent=11 // pred_check
          %p321 = pneg %p178
        $region26: #{tpu_custom_call.1} parent=11 // pred_check_branch
          %323 = sbr.rel (%p321) target = $region28
        $region27: #{tpu_custom_call.1} parent=11 // pred_region
          _
        $region28: #{tpu_custom_call.1} parent=11 // pred_fallthru
          _
        // Predicated region
        $region29: #{tpu_custom_call.1} parent=11 // pred_check
          %p324 = pneg %p199
        $region30: #{tpu_custom_call.1} parent=11 // pred_check_branch
          %326 = sbr.rel (%p324) target = $region32
        $region31: #{tpu_custom_call.1} parent=11 // pred_region
          _
        $region32: #{tpu_custom_call.1} parent=11 // pred_fallthru
          _
        // Predicated region
        $region33: #{tpu_custom_call.1} parent=11 // pred_check
          %p327 = pneg %p220
        $region34: #{tpu_custom_call.1} parent=11 // pred_check_branch
          %329 = sbr.rel (%p327) target = $region36
        $region35: #{tpu_custom_call.1} parent=11 // pred_region
          _
        $region36: #{tpu_custom_call.1} parent=11 // pred_fallthru
          _
        // Predicated region
        $region37: #{tpu_custom_call.1} parent=11 // pred_check
          %p330 = pneg %p241
        $region38: #{tpu_custom_call.1} parent=11 // pred_check_branch
          %332 = sbr.rel (%p330) target = $region40
        $region39: #{tpu_custom_call.1} parent=11 // pred_region
          _
        $region40: #{tpu_custom_call.1} parent=11 // pred_fallthru
          _
      $region12: #{tpu_custom_call.1} parent=5 // pred_fallthru
        _
      %p333 = scmp.lt.s32.totalorder %s26, 2
      // Predicated region
      $region41: #{tpu_custom_call.1} parent=5 // pred_check
        %p334 = pneg %p333
      $region42: #{tpu_custom_call.1} parent=5 // pred_check_branch
        %336 = sbr.rel (%p334) target = $region44
      $region43: #{tpu_custom_call.1} parent=5 // pred_region
        // Predicated region
        $region45: #{tpu_custom_call.1} parent=43 // pred_check
          %p337 = pneg %p60
        $region46: #{tpu_custom_call.1} parent=43 // pred_check_branch
          %339 = sbr.rel (%p337) target = $region48
        $region47: #{tpu_custom_call.1} parent=43 // pred_region
          %s340 = smul.u32 2, %s34
          %p341 = scmp.lt.s32.totalorder %s33, 1
          %s342 = scalar_select %p341, %s33, 1
          %p343 = scmp.lt.s32.totalorder %s340, 1
          %s344 = scalar_select %p343, %s340, 1
          %s345 = smul.addr %s342, 2
          %s346 = sadd.s32 %s344, %s345
          %s347 = smul.addr %s346, 4
          %s348 = scalar_lea.vmem %s0, %s347
          %s349 = smul.u32 2, %s34
        $region48: #{tpu_custom_call.1} parent=43 // pred_fallthru
          _
        // Predicated region
        $region49: #{tpu_custom_call.1} parent=43 // pred_check
          %p350 = pneg %p88
        $region50: #{tpu_custom_call.1} parent=43 // pred_check_branch
          %352 = sbr.rel (%p350) target = $region52
        $region51: #{tpu_custom_call.1} parent=43 // pred_region
          %s353 = sand.u32 %s78, 1
          %s354 = scalar_lea.sflag [#allocation3], %s353
          %s355 = sand.u32 %s78, 1
          %s356 = smul.addr %s355, 8
          %s357 = scalar_lea.vmem [#allocation2], %s356
          %s358 = smul.u32 2, %s34
          %360 = vsyncadd %s354, 0
          %s361 = smul.addr %s33, 2
          %s362 = sadd.s32 %s358, %s361
          %s363 = smul.addr %s362, 4
          %s364 = scalar_lea.hbm %s1, %s363
          %s366 = sshll.u32 %s364, 4
          %s367 = int_to_ptr.hbm [resolvable:$true] %s366
          %s368 = sshll.u32 %s357, 4
          %s369 = int_to_ptr.vmem [resolvable:$true] %s368
          %371 = dma.hbm_to_vmem [thread:$0]  %s367, 128, %s369, %s354
        $region52: #{tpu_custom_call.1} parent=43 // pred_fallthru
          _
      $region44: #{tpu_custom_call.1} parent=5 // pred_fallthru
        _
      %p372 = scmp.le.s32.totalorder 1, %s26
      %p373 = scmp.lt.s32.totalorder %s26, 3
      %p374 = pnand %p372, %p373
      %p375 = pneg %p374
      // Predicated region
      $region53: #{tpu_custom_call.1} parent=5 // pred_check
        _
      $region54: #{tpu_custom_call.1} parent=5 // pred_check_branch
        %377 = sbr.rel (%p374) target = $region56
      $region55: #{tpu_custom_call.1} parent=5 // pred_region
        %s378 = ssub.s32 %s26, 1
        %s379 = sand.u32 %s81, 1
        %s380 = scalar_lea.sflag [#allocation3], %s379
        %s381 = sand.u32 %s81, 1
        %s382 = smul.addr %s381, 8
        %s383 = scalar_lea.vmem [#allocation2], %s382
        // Predicated region
        $region57: #{tpu_custom_call.1} parent=55 // pred_check
          %p384 = pneg %p94
        $region58: #{tpu_custom_call.1} parent=55 // pred_check_branch
          %386 = sbr.rel (%p384) target = $region60
        $region59: #{tpu_custom_call.1} parent=55 // pred_region
          %388 = dma.done %s380, 128
        $region60: #{tpu_custom_call.1} parent=55 // pred_fallthru
          _
        %s389 = smul.u32 2, %s36
        %p390 = scmp.lt.s32.totalorder %s35, 1
        %s391 = scalar_select %p390, %s35, 1
        %p392 = scmp.lt.s32.totalorder %s389, 1
        %s393 = scalar_select %p392, %s389, 1
        %s394 = smul.addr %s391, 2
        %s395 = sadd.s32 %s393, %s394
        %s396 = smul.addr %s395, 4
        %s397 = scalar_lea.vmem %s0, %s396
        %p398 = pneg %p66
        %p399 = pneg %p63
        %s400 = sand.u32 %s81, 1
        %s401 = scalar_lea.sflag [#allocation3], %s400
        %s402 = sand.u32 %s81, 1
        %s403 = smul.addr %s402, 8
        %s404 = scalar_lea.vmem [#allocation2], %s403
        %p405 = pneg %p94
        %p406 = pneg %p91
        %p407 = pneg %p115
        %p408 = pneg %p112
        %p409 = pneg %p136
        %p410 = pneg %p133
        %p411 = pneg %p157
        %p412 = pneg %p154
        %p413 = pneg %p178
        %p414 = pneg %p175
        %p415 = pneg %p199
        %p416 = pneg %p196
        %p417 = pneg %p220
        %p418 = pneg %p217
        %p419 = pneg %p241
        %p420 = pneg %p238
        %p421 = pneg %p269
        %p422 = pneg %p266
        %s423 = sand.u32 %s256, 1
        %s424 = scalar_lea.sflag [#allocation4], %s423
        %s425 = sand.u32 %s256, 1
        %s426 = smul.addr %s425, 8
        %s427 = scalar_lea.vmem [#allocation5], %s426
        %p428 = pneg %p297
        %p429 = pneg %p294
        %s430 = sand.u32 %s284, 1
        %s431 = scalar_lea.sflag [#allocation7], %s430
        %s432 = sand.u32 %s284, 1
        %s433 = smul.addr %s432, 8
        %s434 = scalar_lea.vmem [#allocation6], %s433
        %s435 = smul.u32 2, %s36
        %p436 = scmp.lt.s32.totalorder %s35, 1
        %s437 = scalar_select %p436, %s35, 1
        %p438 = scmp.lt.s32.totalorder %s435, 1
        %s439 = scalar_select %p438, %s435, 1
        %s440 = smul.addr %s437, 2
        %s441 = sadd.s32 %s439, %s440
        %s442 = smul.addr %s441, 4
        %s443 = scalar_lea.vmem %s0, %s442
        %s444 = smul.u32 2, %s36
        %s445 = smul.u32 2, %s36
        %s446 = smul.u32 2, %s36
        %s447 = smul.u32 2, %s36
        %v448 = vld [vmem:[%s443] sm:$0xff]
        %v449 = vld [vmem:[%s383] sm:$0xff]
        %v450 = vld [vmem:[%s2] sm:$0xf]
        %v451 = vld [vmem:[%s3] sm:$0xf]
        %453 = vst [vmem:[#allocation1] ss:$2 sm:$0xff] %v449
        %v454 = vld.sshfl [vmem:[#allocation1] sm:$0xff pattern:$0x75316420]
        %v455 = vld.sshfl [vmem:[#allocation1 + $0x8] sm:$0xff pattern:$0x75316420]
        %vm456 = vcmask 31744
        %v458 = vsel %vm456, %v451, 0
        %vm460 = vcmask 1043456
        %v461 = vsel %vm460, %v454, 0
        %v463 = vsel %vm460, %v455, 0
        %465 = vmatpush.msra.mxu0 0.0
        %466 = vmatpush.msra.mxu0 0.0
        %467 = vmatpush.msra.mxu0 0.0
        %468 = vmatpush.msra.mxu0 0.0
        %469 = vmatpush.msra.mxu0 0.0
        %470 = vmatpush.msra.mxu0 0.0
        %471 = vmatpush.msra.mxu0 0.0
        %472 = vmatpush.msra.mxu0 0.0
        %473 = vmatpush.msra.mxu0 0.0
        %474 = vmatpush.msra.mxu0 0.0
        %475 = vmatpush.msra.mxu0 0.0
        %476 = vmatpush.msra.mxu0 0.0
        %477 = vmatpush.msra.mxu0 0.0
        %478 = vmatpush.msra.mxu0 0.0
        %479 = vmatpush.msra.mxu0 0.0
        %480 = vmatpush.msra.mxu0 %v461
        %481 = vmatmul.f32.gmra.mxu0 %v458
        %v482 = vpop.f32.mrf.mxu0
        %v483 = vadd.f32 0.0, %v482
        %484 = vdwg.mxu0
        %485 = vmatpush.msra.mxu0 0.0
        %486 = vmatpush.msra.mxu0 0.0
        %487 = vmatpush.msra.mxu0 0.0
        %488 = vmatpush.msra.mxu0 0.0
        %489 = vmatpush.msra.mxu0 0.0
        %490 = vmatpush.msra.mxu0 0.0
        %491 = vmatpush.msra.mxu0 0.0
        %492 = vmatpush.msra.mxu0 0.0
        %493 = vmatpush.msra.mxu0 0.0
        %494 = vmatpush.msra.mxu0 0.0
        %495 = vmatpush.msra.mxu0 0.0
        %496 = vmatpush.msra.mxu0 0.0
        %497 = vmatpush.msra.mxu0 0.0
        %498 = vmatpush.msra.mxu0 0.0
        %499 = vmatpush.msra.mxu0 0.0
        %500 = vmatpush.msra.mxu0 %v463
        %501 = vmatmul.f32.gmra.mxu0 %v458
        %v502 = vpop.f32.mrf.mxu0
        %v503 = vadd.f32 0.0, %v502
        %504 = vdwg.mxu0
        %506 = vst [vmem:[#allocation1] ss:$2 sm:$0xff] %v448
        %v507 = vld.sshfl [vmem:[#allocation1] sm:$0xff pattern:$0x75316420]
        %v508 = vld.sshfl [vmem:[#allocation1 + $0x8] sm:$0xff pattern:$0x75316420]
        %v510 = vsel %vm456, %v450, 0
        %v512 = vsel %vm460, %v507, 0
        %v514 = vsel %vm460, %v508, 0
        %516 = vmatpush.msra.mxu0 0.0
        %517 = vmatpush.msra.mxu0 0.0
        %518 = vmatpush.msra.mxu0 0.0
        %519 = vmatpush.msra.mxu0 0.0
        %520 = vmatpush.msra.mxu0 0.0
        %521 = vmatpush.msra.mxu0 0.0
        %522 = vmatpush.msra.mxu0 0.0
        %523 = vmatpush.msra.mxu0 0.0
        %524 = vmatpush.msra.mxu0 0.0
        %525 = vmatpush.msra.mxu0 0.0
        %526 = vmatpush.msra.mxu0 0.0
        %527 = vmatpush.msra.mxu0 0.0
        %528 = vmatpush.msra.mxu0 0.0
        %529 = vmatpush.msra.mxu0 0.0
        %530 = vmatpush.msra.mxu0 0.0
        %531 = vmatpush.msra.mxu0 %v512
        %532 = vmatmul.f32.gmra.mxu0 %v510
        %v533 = vpop.f32.mrf.mxu0
        %v534 = vadd.f32 %v483, %v533
        %535 = vdwg.mxu0
        %536 = vmatpush.msra.mxu0 0.0
        %537 = vmatpush.msra.mxu0 0.0
        %538 = vmatpush.msra.mxu0 0.0
        %539 = vmatpush.msra.mxu0 0.0
        %540 = vmatpush.msra.mxu0 0.0
        %541 = vmatpush.msra.mxu0 0.0
        %542 = vmatpush.msra.mxu0 0.0
        %543 = vmatpush.msra.mxu0 0.0
        %544 = vmatpush.msra.mxu0 0.0
        %545 = vmatpush.msra.mxu0 0.0
        %546 = vmatpush.msra.mxu0 0.0
        %547 = vmatpush.msra.mxu0 0.0
        %548 = vmatpush.msra.mxu0 0.0
        %549 = vmatpush.msra.mxu0 0.0
        %550 = vmatpush.msra.mxu0 0.0
        %551 = vmatpush.msra.mxu0 %v514
        %552 = vmatmul.f32.gmra.mxu0 %v510
        %v553 = vpop.f32.mrf.mxu0
        %v554 = vadd.f32 %v503, %v553
        %555 = vdwg.mxu0
        %v556 = vld [vmem:[%s4] sm:$0xf]
        %558 = vset.pattern.permute.xlu0 0
        %559 = vperm.xlu0 %558, %v556
        %v560 = vpop.permute.xlu0 %559
        %v562 = vadd.f32 %v534, %v560
        %v563 = vadd.f32 %v554, %v560
        %v564 = vtanh.pop %v562
        %v565 = vtanh.pop %v563
        %v566 = vld [vmem:[%s5] sm:$0xff]
        %v567 = vld [vmem:[%s6] sm:$0xff]
        %568 = vst [vmem:[#allocation1] ss:$2 sm:$0xff] %v449
        %v569 = vld.sshfl [vmem:[#allocation1] sm:$0xff pattern:$0x75316420]
        %v570 = vld.sshfl [vmem:[#allocation1 + $0x8] sm:$0xff pattern:$0x75316420]
        %v572 = vsel %vm456, %v567, 0
        %v574 = vsel %vm460, %v569, 0
        %v576 = vsel %vm460, %v570, 0
        %578 = vmatpush.msra.mxu0 0.0
        %579 = vmatpush.msra.mxu0 0.0
        %580 = vmatpush.msra.mxu0 0.0
        %581 = vmatpush.msra.mxu0 0.0
        %582 = vmatpush.msra.mxu0 0.0
        %583 = vmatpush.msra.mxu0 0.0
        %584 = vmatpush.msra.mxu0 0.0
        %585 = vmatpush.msra.mxu0 0.0
        %586 = vmatpush.msra.mxu0 0.0
        %587 = vmatpush.msra.mxu0 0.0
        %588 = vmatpush.msra.mxu0 0.0
        %589 = vmatpush.msra.mxu0 0.0
        %590 = vmatpush.msra.mxu0 0.0
        %591 = vmatpush.msra.mxu0 0.0
        %592 = vmatpush.msra.mxu0 0.0
        %593 = vmatpush.msra.mxu0 %v574
        %594 = vmatmul.f32.gmra.mxu0 %v572
        %v595 = vpop.f32.mrf.mxu0
        %v596 = vadd.f32 0.0, %v595
        %597 = vdwg.mxu0
        %598 = vmatpush.msra.mxu0 0.0
        %599 = vmatpush.msra.mxu0 0.0
        %600 = vmatpush.msra.mxu0 0.0
        %601 = vmatpush.msra.mxu0 0.0
        %602 = vmatpush.msra.mxu0 0.0
        %603 = vmatpush.msra.mxu0 0.0
        %604 = vmatpush.msra.mxu0 0.0
        %605 = vmatpush.msra.mxu0 0.0
        %606 = vmatpush.msra.mxu0 0.0
        %607 = vmatpush.msra.mxu0 0.0
        %608 = vmatpush.msra.mxu0 0.0
        %609 = vmatpush.msra.mxu0 0.0
        %610 = vmatpush.msra.mxu0 0.0
        %611 = vmatpush.msra.mxu0 0.0
        %612 = vmatpush.msra.mxu0 0.0
        %613 = vmatpush.msra.mxu0 %v576
        %614 = vmatmul.f32.gmra.mxu0 %v572
        %v615 = vpop.f32.mrf.mxu0
        %v616 = vadd.f32 0.0, %v615
        %617 = vdwg.mxu0
        %v619 = vsel %vm456, %v566, 0
        %v622 = vsel %vm460, %v564, 0
        %v625 = vsel %vm460, %v565, 0
        %627 = vmatpush.msra.mxu0 0.0
        %628 = vmatpush.msra.mxu0 0.0
        %629 = vmatpush.msra.mxu0 0.0
        %630 = vmatpush.msra.mxu0 0.0
        %631 = vmatpush.msra.mxu0 0.0
        %632 = vmatpush.msra.mxu0 0.0
        %633 = vmatpush.msra.mxu0 0.0
        %634 = vmatpush.msra.mxu0 0.0
        %635 = vmatpush.msra.mxu0 0.0
        %636 = vmatpush.msra.mxu0 0.0
        %637 = vmatpush.msra.mxu0 0.0
        %638 = vmatpush.msra.mxu0 0.0
        %639 = vmatpush.msra.mxu0 0.0
        %640 = vmatpush.msra.mxu0 0.0
        %641 = vmatpush.msra.mxu0 0.0
        %642 = vmatpush.msra.mxu0 %v622
        %643 = vmatmul.f32.gmra.mxu0 %v619
        %v644 = vpop.f32.mrf.mxu0
        %v645 = vadd.f32 %v596, %v644
        %646 = vdwg.mxu0
        %647 = vmatpush.msra.mxu0 0.0
        %648 = vmatpush.msra.mxu0 0.0
        %649 = vmatpush.msra.mxu0 0.0
        %650 = vmatpush.msra.mxu0 0.0
        %651 = vmatpush.msra.mxu0 0.0
        %652 = vmatpush.msra.mxu0 0.0
        %653 = vmatpush.msra.mxu0 0.0
        %654 = vmatpush.msra.mxu0 0.0
        %655 = vmatpush.msra.mxu0 0.0
        %656 = vmatpush.msra.mxu0 0.0
        %657 = vmatpush.msra.mxu0 0.0
        %658 = vmatpush.msra.mxu0 0.0
        %659 = vmatpush.msra.mxu0 0.0
        %660 = vmatpush.msra.mxu0 0.0
        %661 = vmatpush.msra.mxu0 0.0
        %662 = vmatpush.msra.mxu0 %v625
        %663 = vmatmul.f32.gmra.mxu0 %v619
        %v664 = vpop.f32.mrf.mxu0
        %v665 = vadd.f32 %v616, %v664
        %666 = vdwg.mxu0
        %v667 = vld [vmem:[%s7] sm:$0xff]
        %668 = vst [vmem:[#allocation1] ss:$2 sm:$0xff] %v448
        %v669 = vld.sshfl [vmem:[#allocation1] sm:$0xff pattern:$0x75316420]
        %v670 = vld.sshfl [vmem:[#allocation1 + $0x8] sm:$0xff pattern:$0x75316420]
        %v672 = vsel %vm456, %v667, 0
        %v674 = vsel %vm460, %v669, 0
        %v676 = vsel %vm460, %v670, 0
        %678 = vmatpush.msra.mxu0 0.0
        %679 = vmatpush.msra.mxu0 0.0
        %680 = vmatpush.msra.mxu0 0.0
        %681 = vmatpush.msra.mxu0 0.0
        %682 = vmatpush.msra.mxu0 0.0
        %683 = vmatpush.msra.mxu0 0.0
        %684 = vmatpush.msra.mxu0 0.0
        %685 = vmatpush.msra.mxu0 0.0
        %686 = vmatpush.msra.mxu0 0.0
        %687 = vmatpush.msra.mxu0 0.0
        %688 = vmatpush.msra.mxu0 0.0
        %689 = vmatpush.msra.mxu0 0.0
        %690 = vmatpush.msra.mxu0 0.0
        %691 = vmatpush.msra.mxu0 0.0
        %692 = vmatpush.msra.mxu0 0.0
        %693 = vmatpush.msra.mxu0 %v674
        %694 = vmatmul.f32.gmra.mxu0 %v672
        %v695 = vpop.f32.mrf.mxu0
        %v696 = vadd.f32 0.0, %v695
        %697 = vdwg.mxu0
        %698 = vmatpush.msra.mxu0 0.0
        %699 = vmatpush.msra.mxu0 0.0
        %700 = vmatpush.msra.mxu0 0.0
        %701 = vmatpush.msra.mxu0 0.0
        %702 = vmatpush.msra.mxu0 0.0
        %703 = vmatpush.msra.mxu0 0.0
        %704 = vmatpush.msra.mxu0 0.0
        %705 = vmatpush.msra.mxu0 0.0
        %706 = vmatpush.msra.mxu0 0.0
        %707 = vmatpush.msra.mxu0 0.0
        %708 = vmatpush.msra.mxu0 0.0
        %709 = vmatpush.msra.mxu0 0.0
        %710 = vmatpush.msra.mxu0 0.0
        %711 = vmatpush.msra.mxu0 0.0
        %712 = vmatpush.msra.mxu0 0.0
        %713 = vmatpush.msra.mxu0 %v676
        %714 = vmatmul.f32.gmra.mxu0 %v672
        %v715 = vpop.f32.mrf.mxu0
        %v716 = vadd.f32 0.0, %v715
        %717 = vdwg.mxu0
        %v718 = vadd.f32 %v645, %v696
        %v719 = vadd.f32 %v665, %v716
        %v720 = vld [vmem:[%s8] sm:$0xff]
        %722 = vset.pattern.permute.xlu0 0
        %723 = vperm.xlu0 %722, %v720
        %v724 = vpop.permute.xlu0 %723
        %v726 = vadd.f32 %v718, %v724
        %v727 = vadd.f32 %v719, %v724
        %v728 = vtanh.pop %v726
        %v729 = vtanh.pop %v727
        %v732 = vrot.slane %v729, 4
        %v733 = vsel %vm460, %v728, %v732
        %735 = vst [vmem:[%s427] sm:$0xff] %v733
        %738 = vst.sshfl [vmem:[#allocation1] sm:$0xff pattern:$0x75316420] %v726
        %739 = vst.sshfl [vmem:[#allocation1 + $0x8] sm:$0xff pattern:$0x75316420] %v727
        %s740 = scalar_lea.vmem [#allocation1], 1
        %v741 = vld [vmem:[%s740] ss:$2 sm:$0xff]
        %743 = vst [vmem:[%s434] sm:$0xff] %v741
        %s744 = sand.u32 %s256, 1
        %s745 = scalar_lea.sflag [#allocation4], %s744
        %s746 = sand.u32 %s256, 1
        %s747 = smul.addr %s746, 8
        %s748 = scalar_lea.vmem [#allocation5], %s747
        %s749 = sand.u32 %s284, 1
        %s750 = scalar_lea.sflag [#allocation7], %s749
        %s751 = sand.u32 %s284, 1
        %s752 = smul.addr %s751, 8
        %s753 = scalar_lea.vmem [#allocation6], %s752
        // Predicated region
        $region61: #{tpu_custom_call.1} parent=55 // pred_check
          %p754 = pneg %p266
        $region62: #{tpu_custom_call.1} parent=55 // pred_check_branch
          %756 = sbr.rel (%p754) target = $region64
        $region63: #{tpu_custom_call.1} parent=55 // pred_region
          %s757 = smul.u32 2, %s36
          %759 = vsyncadd %s745, 0
          %s760 = smul.addr %s35, 2
          %s761 = sadd.s32 %s757, %s760
          %s762 = smul.addr %s761, 4
          %s763 = scalar_lea.hbm %s9, %s762
          %s765 = sshll.u32 %s748, 4
          %s766 = int_to_ptr.vmem [resolvable:$true] %s765
          %s767 = sshll.u32 %s763, 4
          %s768 = int_to_ptr.hbm [resolvable:$true] %s767
          %770 = dma.vmem_to_hbm [thread:$0]  %s766, 128, %s768, %s745
        $region64: #{tpu_custom_call.1} parent=55 // pred_fallthru
          _
        // Predicated region
        $region65: #{tpu_custom_call.1} parent=55 // pred_check
          %p771 = pneg %p294
        $region66: #{tpu_custom_call.1} parent=55 // pred_check_branch
          %773 = sbr.rel (%p771) target = $region68
        $region67: #{tpu_custom_call.1} parent=55 // pred_region
          %s774 = smul.u32 2, %s36
          %776 = vsyncadd %s750, 0
          %s777 = smul.addr %s35, 2
          %s778 = sadd.s32 %s774, %s777
          %s779 = smul.addr %s778, 4
          %s780 = scalar_lea.hbm %s10, %s779
          %s782 = sshll.u32 %s753, 4
          %s783 = int_to_ptr.vmem [resolvable:$true] %s782
          %s784 = sshll.u32 %s780, 4
          %s785 = int_to_ptr.hbm [resolvable:$true] %s784
          %787 = dma.vmem_to_hbm [thread:$0]  %s783, 128, %s785, %s750
        $region68: #{tpu_custom_call.1} parent=55 // pred_fallthru
          _
      $region56: #{tpu_custom_call.1} parent=5 // pred_fallthru
        _
      %p788 = scmp.le.s32.totalorder 2, %s26
      // Predicated region
      $region69: #{tpu_custom_call.1} parent=5 // pred_check
        %p789 = pneg %p788
      $region70: #{tpu_custom_call.1} parent=5 // pred_check_branch
        %791 = sbr.rel (%p789) target = $region72
      $region71: #{tpu_custom_call.1} parent=5 // pred_region
        %s792 = ssub.s32 %s26, 2
        // Predicated region
        $region73: #{tpu_custom_call.1} parent=71 // pred_check
          %p793 = pneg %p272
        $region74: #{tpu_custom_call.1} parent=71 // pred_check_branch
          %795 = sbr.rel (%p793) target = $region76
        $region75: #{tpu_custom_call.1} parent=71 // pred_region
          %s796 = sand.u32 %s257, 1
          %s797 = scalar_lea.sflag [#allocation4], %s796
          %s798 = sand.u32 %s257, 1
          %s799 = smul.addr %s798, 8
          %s800 = scalar_lea.vmem [#allocation5], %s799
          %802 = dma.done %s797, 128
        $region76: #{tpu_custom_call.1} parent=71 // pred_fallthru
          _
        // Predicated region
        $region77: #{tpu_custom_call.1} parent=71 // pred_check
          %p803 = pneg %p300
        $region78: #{tpu_custom_call.1} parent=71 // pred_check_branch
          %805 = sbr.rel (%p803) target = $region80
        $region79: #{tpu_custom_call.1} parent=71 // pred_region
          %s806 = sand.u32 %s285, 1
          %s807 = scalar_lea.sflag [#allocation7], %s806
          %s808 = sand.u32 %s285, 1
          %s809 = smul.addr %s808, 8
          %s810 = scalar_lea.vmem [#allocation6], %s809
          %812 = dma.done %s807, 128
        $region80: #{tpu_custom_call.1} parent=71 // pred_fallthru
          _
      $region72: #{tpu_custom_call.1} parent=5 // pred_fallthru
        _
    $region6: #{tpu_custom_call.1} parent=1 // loop_footer
      %s30 = sadd.s32 1, %s26
    $region7: #{tpu_custom_call.1} parent=1 // loop_footer_branch
      %25 = sbr.rel target = $region3
    $region8: #{tpu_custom_call.1} parent=1 // loop_exit
      _
    %813 = vsyncpa [#allocation3], 1
    %s814 = scalar_lea.sflag [#allocation3], 1
    %815 = vsyncpa %s814, 1
    %816 = vsyncpa [#allocation4], 1
    %s817 = scalar_lea.sflag [#allocation4], 1
    %818 = vsyncpa %s817, 1
    %819 = vsyncpa [#allocation7], 1
    %s820 = scalar_lea.sflag [#allocation7], 1
    %821 = vsyncpa %s820, 1

</llo_original>
